<compile_context>
chip_gen: v7x
topology: tpu7x:2x2x1
jax: 0.10.0
libtpu: 0.0.40
codegen_flags: <defaults>
</compile_context>

<pallas_src>
import jax
import jax.numpy as jnp
from jax.experimental import pallas as pl
from jax.experimental.pallas import tpu as pltpu


# ------------------------------- kernels ------------------------------------

def _linear_kernel_direct(x_ref, w_ref, b_ref, o_ref):
    """f32-output path: accumulate straight into the output tile.

    x_ref: [tm, tk]   activation tile
    w_ref: [tk, tn]   weight tile (pre-transposed in the wrapper)
    b_ref: [1,  tn]   bias tile
    o_ref: [tm, tn]   f32 output tile, resident across the K grid axis
    """
    k = pl.program_id(2)

    @pl.when(k == 0)
    def _init():
        o_ref[...] = jnp.broadcast_to(
            b_ref[...].astype(jnp.float32), o_ref.shape)

    o_ref[...] += jnp.dot(x_ref[...], w_ref[...],
                          preferred_element_type=jnp.float32)


def _linear_kernel_scratch(x_ref, w_ref, b_ref, o_ref, acc_ref):
    """Non-f32-output path: full-precision f32 VMEM accumulator + final cast."""
    k = pl.program_id(2)

    @pl.when(k == 0)
    def _init():
        acc_ref[...] = jnp.broadcast_to(
            b_ref[...].astype(jnp.float32), acc_ref.shape)

    acc_ref[...] += jnp.dot(x_ref[...], w_ref[...],
                            preferred_element_type=jnp.float32)

    @pl.when(k == pl.num_programs(2) - 1)
    def _store():
        o_ref[...] = acc_ref[...].astype(o_ref.dtype)


# ------------------------------ tile helpers --------------------------------

def _vmem_capacity_bytes():
    """Per-core VMEM capacity; conservative fallback = v7x's 64 MiB/TC."""
    try:
        info = pltpu.get_tpu_info()
        cap = int(getattr(info, "vmem_capacity_bytes", 0) or 0)
        if cap > 0:
            return cap
    except Exception:
        pass
    return 64 * 1024 * 1024


def _largest_aligned_divisor(n, cap, align):
    """Largest d <= cap with d % align == 0 and n % d == 0 (None if none)."""
    d = (min(cap, n) // align) * align
    while d >= align:
        if n % d == 0:
            return d
        d -= align
    return None


def _working_set_bytes(tm, tn, tk, xb, wb, bb, ob, use_scratch):
    ws = (2 * tm * tk * xb      # x tile      (double buffered)
          + 2 * tk * tn * wb    # weight tile (double buffered)
          + 2 * tn * bb         # bias tile
          + 2 * tm * tn * ob)   # output tile
    if use_scratch:
        ws += tm * tn * 4       # f32 accumulator
    return ws


# ------------------------------- wrapper -------------------------------------

def dummy_linear_forward(x, weight, bias=None, *, tm=None, tn=None, tk=None,
                         compute_dtype=None):
    """Pallas implementation of nn.Linear forward.

    x:      [..., in_features]
    weight: [out_features, in_features]   (PyTorch layout)
    bias:   [out_features] or None
    compute_dtype: optional dtype (e.g. jnp.bfloat16) for the MXU inputs;
        accumulation stays f32 and the output keeps x.dtype.
    returns [..., out_features]
    """
    out_features, in_features = weight.shape
    assert x.shape[-1] == in_features

    orig_shape = x.shape
    out_dtype = x.dtype
    x2d = x.reshape(-1, in_features)
    M, K, N = x2d.shape[0], in_features, out_features

    # One-time wrapper-side transpose: the kernel contracts (1,)x(0,), so no
    # per-step transpose of the weight tile is ever needed inside the kernel.
    wt = weight.T                                      # [K, N]
    if bias is None:
        bias = jnp.zeros((N,), dtype=weight.dtype)
    b2d = bias.reshape(1, N)

    if compute_dtype is not None:
        x2d = x2d.astype(compute_dtype)
        wt = wt.astype(compute_dtype)

    xb = jnp.dtype(x2d.dtype).itemsize
    wb = jnp.dtype(wt.dtype).itemsize
    bb = jnp.dtype(b2d.dtype).itemsize
    ob = jnp.dtype(out_dtype).itemsize
    use_scratch = jnp.dtype(out_dtype) != jnp.dtype(jnp.float32)

    vmem_cap = _vmem_capacity_bytes()
    budget = int(0.45 * vmem_cap)          # working-set target; keeps headroom

    # ---- M tile: multiple of 8 (or == M); prefer an exact divisor ----------
    if tm is None:
        tm = M if M <= 512 else (_largest_aligned_divisor(M, 512, 8) or 512)
    tm = min(tm, M)

    # ---- N tile: multiple of 128 (or == N); prefer an exact divisor --------
    if tn is None:
        tn = N if N <= 512 else (_largest_aligned_divisor(N, 512, 128) or 512)
    tn = min(tn, N)

    # ---- v7x: guarantee >= 2 parallel blocks so both TensorCores get work --
    if pl.cdiv(M, tm) * pl.cdiv(N, tn) == 1:
        if M >= 16 and M % 16 == 0:
            tm = M // 2
        elif N >= 256 and N % 256 == 0:
            tn = N // 2

    # ---- K tile: whole K when it fits VMEM (=> resident operand is streamed
    #      from HBM exactly once); otherwise the largest multiple-of-128
    #      DIVISOR of K that fits, so no padding ever enters the reduction. --
    def _ws(tk_):
        return _working_set_bytes(tm, tn, tk_, xb, wb, bb, ob, use_scratch)

    if tk is None:
        tk = K
        if K > 128 and _ws(K) > budget:
            d = (min(K, 4096) // 128) * 128
            while d >= 128:
                if K % d == 0 and _ws(d) <= budget:
                    tk = d
                    break
                d -= 128
    else:
        tk = min(tk, K)
        assert tk == K or (K % tk == 0 and tk % 128 == 0), (
            "explicit tk must divide K exactly and be a multiple of 128 "
            "(a partial K block would feed padding into the reduction)")

    n_m, n_n, n_k = pl.cdiv(M, tm), pl.cdiv(N, tn), pl.cdiv(K, tk)

    # ---- adaptive nesting: the larger operand is the one fetched once ------
    m_outer = (M * K * xb) > (K * N * wb)
    if m_outer:
        grid = (n_m, n_n, n_k)
        x_map = lambda i, j, k: (i, k)
        w_map = lambda i, j, k: (k, j)
        b_map = lambda i, j, k: (0, j)
        o_map = lambda i, j, k: (i, j)
        x_passes, w_passes = 1, n_m
    else:
        grid = (n_n, n_m, n_k)
        x_map = lambda j, i, k: (i, k)
        w_map = lambda j, i, k: (k, j)
        b_map = lambda j, i, k: (0, j)
        o_map = lambda j, i, k: (i, j)
        x_passes, w_passes = n_n, 1

    ws = _ws(tk)
    vmem_limit = int(min(max(2 * ws, 32 * 1024 * 1024), int(0.85 * vmem_cap)))

    cost = pl.CostEstimate(
        flops=2 * M * N * K,
        transcendentals=0,
        bytes_accessed=(x2d.size * xb * x_passes
                        + wt.size * wb * w_passes
                        + N * bb + M * N * ob))

    kernel = _linear_kernel_scratch if use_scratch else _linear_kernel_direct
    scratch = [pltpu.VMEM((tm, tn), jnp.float32)] if use_scratch else []

    out2d = pl.pallas_call(
        kernel,
        out_shape=jax.ShapeDtypeStruct((M, N), out_dtype),
        grid_spec=pltpu.PrefetchScalarGridSpec(
            num_scalar_prefetch=0,
            grid=grid,
            in_specs=[
                pl.BlockSpec((tm, tk), x_map),    # x
                pl.BlockSpec((tk, tn), w_map),    # weight (pre-transposed)
                pl.BlockSpec((1, tn), b_map),     # bias
            ],
            out_specs=pl.BlockSpec((tm, tn), o_map),
            scratch_shapes=scratch,
        ),
        compiler_params=pltpu.CompilerParams(
            dimension_semantics=("parallel", "parallel", "arbitrary"),
            vmem_limit_bytes=vmem_limit),
        cost_estimate=cost,
    )(x2d, wt, b2d)

    return out2d.reshape(*orig_shape[:-1], N)


def init_linear_params(key, in_features, out_features, dtype=jnp.float32):
    """Deterministic init mirroring nn.Linear.reset_parameters():
    weight, bias ~ U(-1/sqrt(in_features), 1/sqrt(in_features))."""
    kw, kb = jax.random.split(key)
    bound = 1.0 / (in_features ** 0.5)
    weight = jax.random.uniform(
        kw, (out_features, in_features), dtype=dtype, minval=-bound, maxval=bound)
    bias = jax.random.uniform(
        kb, (out_features,), dtype=dtype, minval=-bound, maxval=bound)
    return weight, bias


if __name__ == "__main__":
    key = jax.random.PRNGKey(0)
    k_x, k_p, k_x2, k_p2 = jax.random.split(key, 4)

    # ---- small case matching the module's intended usage -------------------
    batch, seq, in_features, out_features = 2, 8, 32, 64
    x = jax.random.normal(k_x, (batch, seq, in_features), dtype=jnp.float32)
    weight, bias = init_linear_params(k_p, in_features, out_features)

    y = jax.block_until_ready(dummy_linear_forward(x, weight, bias))
    y_ref = x @ weight.T + bias
    assert y.shape == (batch, seq, out_features)
    assert jnp.allclose(y, y_ref, atol=1e-3, rtol=1e-3), (
        float(jnp.max(jnp.abs(y - y_ref))))

    # ---- larger case exercising tile divisors, nesting flip, edge blocks ---
    M2, K2, N2 = 640, 1024, 384
    x2 = jax.random.normal(k_x2, (M2, K2), dtype=jnp.float32)
    w2, b2 = init_linear_params(k_p2, K2, N2)
    y2 = jax.block_until_ready(dummy_linear_forward(x2, w2, b2))
    y2_ref = x2 @ w2.T + b2
    assert y2.shape == (M2, N2)
    assert jnp.allclose(y2, y2_ref, atol=1e-2, rtol=1e-2), (
        float(jnp.max(jnp.abs(y2 - y2_ref))))

    print("KERNEL_OK")
</pallas_src>

<mosaic_0001>
module attributes {stable_mosaic.version = 11 : i64} {
  func.func @_linear_kernel_direct(%arg0: i32, %arg1: i32, %arg2: i32, %arg3: memref<8x32xf32, #tpu.memory_space<vmem>>, %arg4: memref<32x64xf32, #tpu.memory_space<vmem>>, %arg5: memref<1x64xf32, #tpu.memory_space<vmem>>, %arg6: memref<8x64xf32, #tpu.memory_space<vmem>>) attributes {dimension_semantics = [#tpu.dimension_semantics<parallel>, #tpu.dimension_semantics<parallel>, #tpu.dimension_semantics<arbitrary>], iteration_bounds = array<i64: 1, 2, 1>, scalar_prefetch = 0 : i64, scratch_operands = 0 : i64, tpu.core_type = #tpu.core_type<tc>, window_params = [{transform_indices = @transform_0, window_bounds = array<i64: 8, 32>}, {transform_indices = @transform_1, window_bounds = array<i64: 32, 64>}, {transform_indices = @transform_2, window_bounds = array<i64: 1, 64>}, {transform_indices = @transform_3, window_bounds = array<i64: 8, 64>}]} {
    %c0_i32 = arith.constant 0 : i32
    %0 = arith.cmpi eq, %arg2, %c0_i32 : i32
    %1 = arith.extui %0 : i1 to i32
    %c0_i32_0 = arith.constant 0 : i32
    %2 = arith.cmpi ne, %1, %c0_i32_0 : i32
    scf.if %2 {
      %c0_8 = arith.constant 0 : index
      %c0_9 = arith.constant 0 : index
      %9 = vector.load %arg5[%c0_8, %c0_9] : memref<1x64xf32, #tpu.memory_space<vmem>>, vector<1x64xf32>
      %10 = vector.shape_cast %9 : vector<1x64xf32> to vector<1x64xf32>
      %11 = vector.broadcast %10 : vector<1x64xf32> to vector<8x64xf32>
      %c0_10 = arith.constant 0 : index
      %c0_11 = arith.constant 0 : index
      %12 = vector.load %arg6[%c0_10, %c0_11] : memref<8x64xf32, #tpu.memory_space<vmem>>, vector<8x64xf32>
      tpu.vector_store %arg6[%c0_10, %c0_11], %11 {strides = array<i32>} : memref<8x64xf32, #tpu.memory_space<vmem>>, vector<8x64xf32>,
    } else {
    }
    %c0 = arith.constant 0 : index
    %c0_1 = arith.constant 0 : index
    %3 = vector.load %arg6[%c0, %c0_1] : memref<8x64xf32, #tpu.memory_space<vmem>>, vector<8x64xf32>
    %c0_2 = arith.constant 0 : index
    %c0_3 = arith.constant 0 : index
    %4 = vector.load %arg3[%c0_2, %c0_3] : memref<8x32xf32, #tpu.memory_space<vmem>>, vector<8x32xf32>
    %c0_4 = arith.constant 0 : index
    %c0_5 = arith.constant 0 : index
    %5 = vector.load %arg4[%c0_4, %c0_5] : memref<32x64xf32, #tpu.memory_space<vmem>>, vector<32x64xf32>
    %cst = arith.constant dense<0.000000e+00> : vector<8x64xf32>
    %6 = tpu.matmul %4, %5, %cst {dimension_numbers = #tpu.dot_dimension_numbers<[1], [0], [0], [1], [0, 0, 1, 1], [], []>} : vector<8x32xf32>, vector<32x64xf32>, vector<8x64xf32> -> vector<8x64xf32>
    %7 = arith.addf %3, %6 : vector<8x64xf32>
    %c0_6 = arith.constant 0 : index
    %c0_7 = arith.constant 0 : index
    %8 = vector.load %arg6[%c0_6, %c0_7] : memref<8x64xf32, #tpu.memory_space<vmem>>, vector<8x64xf32>
    tpu.vector_store %arg6[%c0_6, %c0_7], %7 {strides = array<i32>} : memref<8x64xf32, #tpu.memory_space<vmem>>, vector<8x64xf32>,
    return
  }
  func.func @transform_0(%arg0: i32, %arg1: i32, %arg2: i32) -> (i32, i32) {
    %c0_i32 = arith.constant 0 : i32
    return %arg1, %arg2 : i32, i32
  }
  func.func @transform_1(%arg0: i32, %arg1: i32, %arg2: i32) -> (i32, i32) {
    %c0_i32 = arith.constant 0 : i32
    return %arg2, %arg0 : i32, i32
  }
  func.func @transform_2(%arg0: i32, %arg1: i32, %arg2: i32) -> (i32, i32) {
    %c0_i32 = arith.constant 0 : i32
    %c0_i32_0 = arith.constant 0 : i32
    return %c0_i32, %arg0 : i32, i32
  }
  func.func @transform_3(%arg0: i32, %arg1: i32, %arg2: i32) -> (i32, i32) {
    %c0_i32 = arith.constant 0 : i32
    return %arg1, %arg0 : i32, i32
  }
}

</mosaic_0001>

<llo_original>
// kernel: tpu_custom_call.1
$region0: #{tpu_custom_call.1}
  #allocation0 [shape = 'u32[]', space=smem, size = 0x4, offset = 0x4, fixed_abs, tag = 'smem constant byte address 0x4 - core index']
  #allocation1 [shape = 'u32[144,128]{1,0:T(1,128)}', space=vmem, size = 0x12000, scoped, tag = 'internal scratch']
  %s0 = inlined_call_operand.hbm [shape: f32[16,32], index: 0, kind: input, shape index: {}]
  %s1 = inlined_call_operand.hbm [shape: f32[32,64], index: 1, kind: input, shape index: {}]
  %s2 = inlined_call_operand.vmem [shape: f32[1,64], index: 2, kind: input, shape index: {}]
  %s3 = inlined_call_operand.hbm [shape: f32[16,64], index: 3, kind: output, shape index: {}]
  %s4 = sld [smem:[#allocation0]]
  $region57: #{tpu_custom_call.1} parent=0
    _
  %s6 = ssub.s32 1, %s4
  %s7 = scalar_select 0, %s6, %s4
  $region1: #{tpu_custom_call.1} parent=0
    #allocation2 [shape = 'u8[8192]{0}', space=vmem, size = 0x2000, scoped, tag = 'input window, operand 0']
    #allocation3 [shape = 's32[2]{0}', space=sflag, size = 0x8, scoped, tag = 'scoped memory for tpu_custom_call.1']
    #allocation4 [shape = 's32[2]{0}', space=sflag, size = 0x8, scoped, tag = 'scoped memory for tpu_custom_call.1']
    #allocation5 [shape = 'u8[16384]{0}', space=vmem, size = 0x4000, scoped, tag = 'input window, operand 1, single buffered']
    #allocation6 [shape = 's32[1]{0}', space=sflag, size = 0x4, scoped, tag = 'scoped memory for tpu_custom_call.1']
    #allocation7 [shape = 'u8[8192]{0}', space=vmem, size = 0x2000, scoped, tag = 'output window, operand 0']
    %8 = vsyncpa [#allocation3], 0
    %s9 = scalar_lea.sflag [#allocation3], 1
    %10 = vsyncpa %s9, 0
    %11 = vsyncpa [#allocation6], 0
    %12 = vsyncpa [#allocation4], 0
    %s13 = scalar_lea.sflag [#allocation4], 1
    %14 = vsyncpa %s13, 0
    loop: start=0, step=1, limit=4
    $region2: #{tpu_custom_call.1} parent=1 // loop_pre_header
      _
    $region3: #{tpu_custom_call.1} parent=1 // loop_header
      %s16 = sphi 0, %s20
      %p17 = scmp.ge.s32.totalorder %s16, 4
      %s23 = sphi 0, %s42
      %s24 = sphi 0, %s38
      %s25 = sphi 0, %s34
      %s26 = sphi 0, %s23
      %s27 = sphi 0, %s24
      %s28 = sphi 0, %s25
      %s29 = sphi 0, %s26
      %s30 = sphi 0, %s27
      %s31 = sphi 0, %s28
      %s47 = sphi 0, %s49
      %s50 = sphi 0, %s47
      %s51 = sphi 0, %s50
      %s67 = sphi 0, %s51
      %s75 = sphi 0, %s77
      %s78 = sphi 0, %s75
      %s79 = sphi 0, %s78
      %s95 = sphi 0, %s79
      %s101 = sphi 0, %s103
      %s104 = sphi 0, %s101
      %s105 = sphi 0, %s104
      %s121 = sphi 0, %s105
      %s129 = sphi 0, %s131
      %s132 = sphi 0, %s129
      %s133 = sphi 0, %s132
      %s149 = sphi 0, %s133
    $region4: #{tpu_custom_call.1} parent=1 // loop_header_branch
      %19 = sbr.rel (%p17) target = $region8
    $region5: #{tpu_custom_call.1} parent=1 // loop_body
      %s21 = ssub.s32 %s16, 1
      %s22 = ssub.s32 %s16, 2
      %s32 = sadd.s32 1, %s25
      %p33 = scmp.ge.s32.totalorder %s32, 1
      %s34 = scalar_select %p33, 0, %s32
      %s35 = sadd.s32 1, %s24
      %s36 = scalar_select %p33, %s35, %s24
      %p37 = scmp.ge.s32.totalorder %s36, 2
      %s38 = scalar_select %p37, 0, %s36
      %s39 = sadd.s32 1, %s23
      %s40 = scalar_select %p37, %s39, %s23
      %p41 = scmp.ge.s32.totalorder %s40, 1
      %s42 = scalar_select %p41, 0, %s40
      %s43 = ssub.s32 %s24, %s38
      %s44 = ssub.s32 %s25, %s34
      %s45 = sor.u32 %s43, %s44
      %p46 = scmp.eq.s32.totalorder %s45, 0
      %s48 = sadd.s32 %s47, 1
      %s49 = scalar_select %p46, %s47, %s48
      %p52 = pneg %p46
      %p53 = scmp.eq.s32.totalorder %s16, 1
      %p54 = por %p52, %p53
      %p55 = scmp.ne.s32.totalorder %s47, %s50
      %p56 = scmp.eq.s32.totalorder %s16, 0
      %p57 = por %p55, %p56
      %p58 = scmp.ne.s32.totalorder %s47, %s50
      %p59 = scmp.eq.s32.totalorder %s21, 1
      %p60 = por %p58, %p59
      %p61 = scmp.ne.s32.totalorder %s50, %s51
      %p62 = scmp.eq.s32.totalorder %s21, 0
      %p63 = por %p61, %p62
      %p64 = scmp.ne.s32.totalorder %s50, %s51
      %p65 = scmp.eq.s32.totalorder %s22, 1
      %p66 = por %p64, %p65
      %p68 = scmp.ne.s32.totalorder %s51, %s67
      %p69 = scmp.eq.s32.totalorder %s22, 0
      %p70 = por %p68, %p69
      %s71 = ssub.s32 %s25, %s34
      %s72 = ssub.s32 %s23, %s42
      %s73 = sor.u32 %s71, %s72
      %p74 = scmp.eq.s32.totalorder %s73, 0
      %s76 = sadd.s32 %s75, 1
      %s77 = scalar_select %p74, %s75, %s76
      %p80 = pneg %p74
      %p81 = scmp.eq.s32.totalorder %s16, 1
      %p82 = por %p80, %p81
      %p83 = scmp.ne.s32.totalorder %s75, %s78
      %p84 = scmp.eq.s32.totalorder %s16, 0
      %p85 = por %p83, %p84
      %p86 = scmp.ne.s32.totalorder %s75, %s78
      %p87 = scmp.eq.s32.totalorder %s21, 1
      %p88 = por %p86, %p87
      %p89 = scmp.ne.s32.totalorder %s78, %s79
      %p90 = scmp.eq.s32.totalorder %s21, 0
      %p91 = por %p89, %p90
      %p92 = scmp.ne.s32.totalorder %s78, %s79
      %p93 = scmp.eq.s32.totalorder %s22, 1
      %p94 = por %p92, %p93
      %p96 = scmp.ne.s32.totalorder %s79, %s95
      %p97 = scmp.eq.s32.totalorder %s22, 0
      %p98 = por %p96, %p97
      %s99 = ssub.s32 %s23, %s42
      %p100 = scmp.eq.s32.totalorder %s99, 0
      %s102 = sadd.s32 %s101, 1
      %s103 = scalar_select %p100, %s101, %s102
      %p106 = pneg %p100
      %p107 = scmp.eq.s32.totalorder %s16, 1
      %p108 = por %p106, %p107
      %p109 = scmp.ne.s32.totalorder %s101, %s104
      %p110 = scmp.eq.s32.totalorder %s16, 0
      %p111 = por %p109, %p110
      %p112 = scmp.ne.s32.totalorder %s101, %s104
      %p113 = scmp.eq.s32.totalorder %s21, 1
      %p114 = por %p112, %p113
      %p115 = scmp.ne.s32.totalorder %s104, %s105
      %p116 = scmp.eq.s32.totalorder %s21, 0
      %p117 = por %p115, %p116
      %p118 = scmp.ne.s32.totalorder %s104, %s105
      %p119 = scmp.eq.s32.totalorder %s22, 1
      %p120 = por %p118, %p119
      %p122 = scmp.ne.s32.totalorder %s105, %s121
      %p123 = scmp.eq.s32.totalorder %s22, 0
      %p124 = por %p122, %p123
      %s125 = ssub.s32 %s24, %s38
      %s126 = ssub.s32 %s23, %s42
      %s127 = sor.u32 %s125, %s126
      %p128 = scmp.eq.s32.totalorder %s127, 0
      %s130 = sadd.s32 %s129, 1
      %s131 = scalar_select %p128, %s129, %s130
      %p134 = pneg %p128
      %p135 = scmp.eq.s32.totalorder %s16, 1
      %p136 = por %p134, %p135
      %p137 = scmp.ne.s32.totalorder %s129, %s132
      %p138 = scmp.eq.s32.totalorder %s16, 0
      %p139 = por %p137, %p138
      %p140 = scmp.ne.s32.totalorder %s129, %s132
      %p141 = scmp.eq.s32.totalorder %s21, 1
      %p142 = por %p140, %p141
      %p143 = scmp.ne.s32.totalorder %s132, %s133
      %p144 = scmp.eq.s32.totalorder %s21, 0
      %p145 = por %p143, %p144
      %p146 = scmp.ne.s32.totalorder %s132, %s133
      %p147 = scmp.eq.s32.totalorder %s22, 1
      %p148 = por %p146, %p147
      %p150 = scmp.ne.s32.totalorder %s133, %s149
      %p151 = scmp.eq.s32.totalorder %s22, 0
      %p152 = por %p150, %p151
      %p153 = scmp.le.s32.totalorder 1, %s16
      %p154 = scmp.lt.s32.totalorder %s16, 3
      %p155 = pnand %p153, %p154
      %p156 = pneg %p155
      // Predicated region
      $region9: #{tpu_custom_call.1} parent=5 // pred_check
        _
      $region10: #{tpu_custom_call.1} parent=5 // pred_check_branch
        %158 = sbr.rel (%p155) target = $region12
      $region11: #{tpu_custom_call.1} parent=5 // pred_region
        %s159 = ssub.s32 %s16, 1
        // Predicated region
        $region13: #{tpu_custom_call.1} parent=11 // pred_check
          %p160 = pneg %p91
        $region14: #{tpu_custom_call.1} parent=11 // pred_check_branch
          %162 = sbr.rel (%p160) target = $region16
        $region15: #{tpu_custom_call.1} parent=11 // pred_region
          %s163 = smul.u32 4, %s28
          %s165 = ssub.s32 512, 512
          %166 = vsyncadd [#allocation6], %s165
          %s167 = sadd.s32 %s26, %s163
          %s168 = smul.addr %s167, 128
          %s169 = scalar_lea.hbm %s1, %s168
          %s170 = sshll.u32 [#allocation5], 4
          %s171 = int_to_ptr.vmem [resolvable:$true] %s170
          %176 = dma.hbm_to_vmem [thread:$0]  %s169, 512, %s171, [#allocation6], 128, 128, 8
        $region16: #{tpu_custom_call.1} parent=11 // pred_fallthru
          _
        // Predicated region
        $region17: #{tpu_custom_call.1} parent=11 // pred_check
          %p177 = pneg %p117
        $region18: #{tpu_custom_call.1} parent=11 // pred_check_branch
          %179 = sbr.rel (%p177) target = $region20
        $region19: #{tpu_custom_call.1} parent=11 // pred_region
          %p180 = scmp.lt.s32.totalorder %s26, 0
          %s181 = scalar_select %p180, %s26, 0
          %s182 = scalar_lea.vmem %s2, %s181
        $region20: #{tpu_custom_call.1} parent=11 // pred_fallthru
          _
      $region12: #{tpu_custom_call.1} parent=5 // pred_fallthru
        _
      %p183 = scmp.lt.s32.totalorder %s16, 2
      // Predicated region
      $region21: #{tpu_custom_call.1} parent=5 // pred_check
        %p184 = pneg %p183
      $region22: #{tpu_custom_call.1} parent=5 // pred_check_branch
        %186 = sbr.rel (%p184) target = $region24
      $region23: #{tpu_custom_call.1} parent=5 // pred_region
        // Predicated region
        $region25: #{tpu_custom_call.1} parent=23 // pred_check
          %p187 = pneg %p57
        $region26: #{tpu_custom_call.1} parent=23 // pred_check_branch
          %189 = sbr.rel (%p187) target = $region28
        $region27: #{tpu_custom_call.1} parent=23 // pred_region
          %s190 = sand.u32 %s47, 1
          %s191 = scalar_lea.sflag [#allocation3], %s190
          %s192 = sand.u32 %s47, 1
          %s193 = smul.addr %s192, 8
          %s194 = scalar_lea.vmem [#allocation2], %s193
          %s196 = ssub.s32 128, 128
          %197 = vsyncadd %s191, %s196
          %s198 = sadd.s32 %s25, %s24
          %s199 = smul.addr %s198, 128
          %s200 = scalar_lea.hbm %s0, %s199
          %s202 = sshll.u32 %s194, 4
          %s203 = int_to_ptr.vmem [resolvable:$true] %s202
          %205 = dma.hbm_to_vmem [thread:$0]  %s200, 128, %s203, %s191
        $region28: #{tpu_custom_call.1} parent=23 // pred_fallthru
          _
      $region24: #{tpu_custom_call.1} parent=5 // pred_fallthru
        _
      %p206 = scmp.le.s32.totalorder 1, %s16
      %p207 = scmp.lt.s32.totalorder %s16, 3
      %p208 = pnand %p206, %p207
      %p209 = pneg %p208
      // Predicated region
      $region29: #{tpu_custom_call.1} parent=5 // pred_check
        _
      $region30: #{tpu_custom_call.1} parent=5 // pred_check_branch
        %211 = sbr.rel (%p208) target = $region32
      $region31: #{tpu_custom_call.1} parent=5 // pred_region
        %s212 = ssub.s32 %s16, 1
        %s213 = sand.u32 %s50, 1
        %s214 = scalar_lea.sflag [#allocation3], %s213
        %s215 = sand.u32 %s50, 1
        %s216 = smul.addr %s215, 8
        %s217 = scalar_lea.vmem [#allocation2], %s216
        // Predicated region
        $region33: #{tpu_custom_call.1} parent=31 // pred_check
          %p218 = pneg %p63
        $region34: #{tpu_custom_call.1} parent=31 // pred_check_branch
          %220 = sbr.rel (%p218) target = $region36
        $region35: #{tpu_custom_call.1} parent=31 // pred_region
          %221 = dma.done %s214, 128
        $region36: #{tpu_custom_call.1} parent=31 // pred_fallthru
          _
        // Predicated region
        $region37: #{tpu_custom_call.1} parent=31 // pred_check
          %p222 = pneg %p91
        $region38: #{tpu_custom_call.1} parent=31 // pred_check_branch
          %224 = sbr.rel (%p222) target = $region40
        $region39: #{tpu_custom_call.1} parent=31 // pred_region
          %225 = dma.done [#allocation6], 512
        $region40: #{tpu_custom_call.1} parent=31 // pred_fallthru
          _
        %s226 = sand.u32 %s50, 1
        %s227 = scalar_lea.sflag [#allocation3], %s226
        %s228 = sand.u32 %s50, 1
        %s229 = smul.addr %s228, 8
        %s230 = scalar_lea.vmem [#allocation2], %s229
        %p231 = pneg %p63
        %p232 = pneg %p60
        %p233 = pneg %p91
        %p234 = pneg %p88
        %p235 = scmp.lt.s32.totalorder %s26, 0
        %s236 = scalar_select %p235, %s26, 0
        %s237 = scalar_lea.vmem %s2, %s236
        %p238 = pneg %p117
        %p239 = pneg %p114
        %p240 = pneg %p145
        %p241 = pneg %p142
        %s242 = sand.u32 %s132, 1
        %s243 = scalar_lea.sflag [#allocation4], %s242
        %s244 = sand.u32 %s132, 1
        %s245 = smul.addr %s244, 8
        %s246 = scalar_lea.vmem [#allocation7], %s245
        %s247 = smul.u32 4, %s28
        %p248 = scmp.lt.s32.totalorder %s26, 0
        %s249 = scalar_select %p248, %s26, 0
        %s250 = scalar_lea.vmem %s2, %s249
        %p251 = scmp.eq.s32.totalorder %s28, 0
        // Predicated region
        $region41: #{tpu_custom_call.1} parent=31 // pred_check
          %p252 = pneg %p251
        $region42: #{tpu_custom_call.1} parent=31 // pred_check_branch
          %254 = sbr.rel (%p252) target = $region44
        $region43: #{tpu_custom_call.1} parent=31 // pred_region
          %v255 = vld [vmem:[%s250] sm:$0x1]
          %v257 = vlaneseq
          %v258 = vshrl.u32 %v257, 7
          %v259 = vsub.s32 0, %v258
          %v260 = vrot.slane %v255, %v259
          %vm262 = vcmask 523264
          %263 = vst.msk [vmem:[%s246] sm:$0xff] %vm262, %v260
        $region44: #{tpu_custom_call.1} parent=31 // pred_fallthru
          _
        %v264 = vld [vmem:[%s246] sm:$0xff]
        %v265 = vld [vmem:[%s217] sm:$0xff]
        %v266 = vld [vmem:[#allocation5] sm:$0xff]
        %v267 = vld [vmem:[#allocation5 + $0x8] sm:$0xff]
        %v268 = vld [vmem:[#allocation5 + $0x10] sm:$0xff]
        %v269 = vld [vmem:[#allocation5 + $0x18] sm:$0xff]
        %vm270 = vcmask 261120
        %v272 = vsel %vm270, %v265, 0
        %274 = vmatprep.subr.mxu0 0.0
        %275 = vmatpush1.msra.mxu0 %v266
        %276 = vmatprep.subr.mxu0 0.0
        %277 = vmatpush1.msra.mxu0 %v267
        %278 = vmatprep.subr.mxu0 0.0
        %279 = vmatpush1.msra.mxu0 %v268
        %280 = vmatprep.subr.mxu0 0.0
        %281 = vmatpush1.msra.mxu0 %v269
        %282 = vmatprep.subr.mxu0 0.0
        %283 = vmatpush1.msra.mxu0 0.0
        %284 = vmatprep.subr.mxu0 0.0
        %285 = vmatpush1.msra.mxu0 0.0
        %286 = vmatprep.subr.mxu0 0.0
        %287 = vmatpush1.msra.mxu0 0.0
        %288 = vmatprep.subr.mxu0 0.0
        %289 = vmatpush1.msra.mxu0 0.0
        %290 = vmatprep.subr.mxu0 0.0
        %291 = vmatpush1.msra.mxu0 0.0
        %292 = vmatprep.subr.mxu0 0.0
        %293 = vmatpush1.msra.mxu0 0.0
        %294 = vmatprep.subr.mxu0 0.0
        %295 = vmatpush1.msra.mxu0 0.0
        %296 = vmatprep.subr.mxu0 0.0
        %297 = vmatpush1.msra.mxu0 0.0
        %298 = vmatprep.subr.mxu0 0.0
        %299 = vmatpush1.msra.mxu0 0.0
        %300 = vmatprep.subr.mxu0 0.0
        %301 = vmatpush1.msra.mxu0 0.0
        %302 = vmatprep.subr.mxu0 0.0
        %303 = vmatpush1.msra.mxu0 0.0
        %304 = vmatprep.subr.mxu0 0.0
        %305 = vmatpush1.msra.mxu0 0.0
        %306 = vmatprep.subr.mxu0 0.0
        %307 = vmatpush1.msra.mxu0 0.0
        %308 = vmatprep.subr.mxu0 0.0
        %309 = vmatpush1.msra.mxu0 0.0
        %310 = vmatprep.subr.mxu0 0.0
        %311 = vmatpush1.msra.mxu0 0.0
        %312 = vmatprep.subr.mxu0 0.0
        %313 = vmatpush1.msra.mxu0 0.0
        %314 = vmatprep.subr.mxu0 0.0
        %315 = vmatpush1.msra.mxu0 0.0
        %316 = vmatprep.subr.mxu0 0.0
        %317 = vmatpush1.msra.mxu0 0.0
        %318 = vmatprep.subr.mxu0 0.0
        %319 = vmatpush1.msra.mxu0 0.0
        %320 = vmatprep.subr.mxu0 0.0
        %321 = vmatpush1.msra.mxu0 0.0
        %322 = vmatprep.subr.mxu0 0.0
        %323 = vmatpush1.msra.mxu0 0.0
        %324 = vmatprep.subr.mxu0 0.0
        %325 = vmatpush1.msra.mxu0 0.0
        %326 = vmatprep.subr.mxu0 0.0
        %327 = vmatpush1.msra.mxu0 0.0
        %328 = vmatprep.subr.mxu0 0.0
        %329 = vmatpush1.msra.mxu0 0.0
        %330 = vmatprep.subr.mxu0 0.0
        %331 = vmatpush1.msra.mxu0 0.0
        %332 = vmatprep.subr.mxu0 0.0
        %333 = vmatpush1.msra.mxu0 0.0
        %334 = vmatprep.subr.mxu0 0.0
        %335 = vmatpush1.msra.mxu0 0.0
        %336 = vmatprep.subr.mxu0 0.0
        %337 = vmatpush1.msra.mxu0 0.0
        %338 = vmatprep.mubr.f32.mxu0 0.0
        %339 = vmatmul.mubr.f32.gmra.mrb[0].mxu0 %v272
        %v340 = vpop.f32.mrb[0].mxu0
        %v341 = vadd.f32 0.0, %v340
        %v342 = vpop.f32.mrb[0].mxu0
        %343 = vdwg.mxu0
        %v344 = vadd.f32 %v264, %v341
        %vm345 = vcmask 523264
        %346 = vst.msk [vmem:[%s246] sm:$0xff] %vm345, %v344
        %s347 = sand.u32 %s132, 1
        %s348 = scalar_lea.sflag [#allocation4], %s347
        %s349 = sand.u32 %s132, 1
        %s350 = smul.addr %s349, 8
        %s351 = scalar_lea.vmem [#allocation7], %s350
        // Predicated region
        $region45: #{tpu_custom_call.1} parent=31 // pred_check
          %p352 = pneg %p142
        $region46: #{tpu_custom_call.1} parent=31 // pred_check_branch
          %354 = sbr.rel (%p352) target = $region48
        $region47: #{tpu_custom_call.1} parent=31 // pred_region
          %s356 = ssub.s32 128, 128
          %357 = vsyncadd %s348, %s356
          %s358 = sadd.s32 %s26, %s27
          %s359 = smul.addr %s358, 128
          %s360 = scalar_lea.hbm %s3, %s359
          %s362 = sshll.u32 %s351, 4
          %s363 = int_to_ptr.vmem [resolvable:$true] %s362
          %365 = dma.vmem_to_hbm [thread:$0]  %s363, 128, %s360, %s348
        $region48: #{tpu_custom_call.1} parent=31 // pred_fallthru
          _
      $region32: #{tpu_custom_call.1} parent=5 // pred_fallthru
        _
      %p366 = scmp.le.s32.totalorder 2, %s16
      // Predicated region
      $region49: #{tpu_custom_call.1} parent=5 // pred_check
        %p367 = pneg %p366
      $region50: #{tpu_custom_call.1} parent=5 // pred_check_branch
        %369 = sbr.rel (%p367) target = $region52
      $region51: #{tpu_custom_call.1} parent=5 // pred_region
        %s370 = ssub.s32 %s16, 2
        // Predicated region
        $region53: #{tpu_custom_call.1} parent=51 // pred_check
          %p371 = pneg %p148
        $region54: #{tpu_custom_call.1} parent=51 // pred_check_branch
          %373 = sbr.rel (%p371) target = $region56
        $region55: #{tpu_custom_call.1} parent=51 // pred_region
          %s374 = sand.u32 %s133, 1
          %s375 = scalar_lea.sflag [#allocation4], %s374
          %s376 = sand.u32 %s133, 1
          %s377 = smul.addr %s376, 8
          %s378 = scalar_lea.vmem [#allocation7], %s377
          %379 = dma.done %s375, 128
        $region56: #{tpu_custom_call.1} parent=51 // pred_fallthru
          _
      $region52: #{tpu_custom_call.1} parent=5 // pred_fallthru
        _
    $region6: #{tpu_custom_call.1} parent=1 // loop_footer
      %s20 = sadd.s32 1, %s16
    $region7: #{tpu_custom_call.1} parent=1 // loop_footer_branch
      %15 = sbr.rel target = $region3
    $region8: #{tpu_custom_call.1} parent=1 // loop_exit
      _
    %380 = vsyncpa [#allocation3], 1
    %s381 = scalar_lea.sflag [#allocation3], 1
    %382 = vsyncpa %s381, 1
    %383 = vsyncpa [#allocation6], 1
    %384 = vsyncpa [#allocation4], 1
    %s385 = scalar_lea.sflag [#allocation4], 1
    %386 = vsyncpa %s385, 1

</llo_original>
